<compile_context>
chip_gen: v6e
topology: v6e:2x2x1
jax: 0.10.0
libtpu: 0.0.40
codegen_flags: <defaults>
</compile_context>

<pallas_src>
import functools

import jax
import jax.numpy as jnp
from jax.experimental import pallas as pl
from jax.experimental.pallas import tpu as pltpu

HIDDEN = 100


def _round_up(x, m):
    return ((x + m - 1) // m) * m


def _num_tensorcores():
    """Best-effort TensorCores-per-chip (2 on v7x, 1 on v5e/v6e)."""
    try:
        info = pltpu.get_tpu_info()
        for name in ("num_cores", "tensorcore_count", "num_tensorcores",
                     "cores_per_chip"):
            n = getattr(info, name, None)
            if isinstance(n, int) and n > 0:
                return n
    except Exception:
        pass
    n = getattr(jax.devices()[0], "num_cores", None)
    if isinstance(n, int) and n > 0:
        return n
    return 1


def _pick_tile(batch, tile_b, n_cores):
    """Lane-dense batch tile (multiple of 128) and padded batch size."""
    tile_b = max(128, (int(tile_b) // 128) * 128)
    bp128 = _round_up(max(batch, 1), 128)
    if bp128 <= tile_b:
        # Whole (padded) batch fits one tile.  Split only when >=2 TensorCores
        # can shard the "parallel" grid axis (v7x); on 1-TC chips extra grid
        # steps are pure overhead.
        if n_cores > 1:
            per_core = bp128 // n_cores
            if per_core >= 128 and per_core % 128 == 0:
                return per_core, bp128
        return bp128, bp128
    return tile_b, _round_up(batch, tile_b)


def _residual_mlp_kernel(x_ref, w1_ref, w2_ref, b2_ref, w3_ref, b3_ref,
                         out_ref, *, s_rows):
    """One batch tile: x (Fp, Tb) feature-major -> out (Sp, Tb)."""
    x = x_ref[...].astype(jnp.float32)            # (Fp, Tb)
    cdt = w1_ref.dtype                            # MXU operand dtype (bf16/f32)

    # Layer 1: b1 is folded into W1 (x carries a constant 1.0 row).
    h1 = jnp.tanh(
        jnp.dot(w1_ref[...], x.astype(cdt), preferred_element_type=jnp.float32))
    # Layer 2.
    h2 = jnp.tanh(
        jnp.dot(w2_ref[...], h1.astype(cdt), preferred_element_type=jnp.float32)
        + b2_ref[...])
    # Layer 3: residual delta.
    delta = (jnp.dot(w3_ref[...], h2.astype(cdt),
                     preferred_element_type=jnp.float32) + b3_ref[...])

    # Residual add.  Rows [0, S) of x are the state; rows [S, s_rows) add
    # action / ones-row values into *padded* output rows, which the wrapper
    # slices off.  Requires Sp <= Fp (asserted in the wrapper).
    out_ref[...] = (delta + x[:s_rows, :]).astype(out_ref.dtype)


def residual_dynamics_forward_fm(xt, kparams, *, tile=None,
                                 out_dtype=jnp.float32):
    """Feature-major kernel entry.

    xt: (Fp, Bp) f32 with rows [0,S)=state, [S,S+A)=action, row S+A = 1.0
        (folded bias), remaining rows zero; Bp a multiple of 128.
    Returns (Sp, Bp); rows [0, S) hold the next state.  Rollout loops should
    stay in this layout to avoid per-step concat/pad/transpose HBM traffic.
    """
    w1, w2, b2, w3, b3 = kparams
    Hp, Fp = w1.shape
    Sp = w3.shape[0]
    fdim, Bp = xt.shape
    assert fdim == Fp and Bp % 128 == 0

    if tile is None:
        tile, _ = _pick_tile(Bp, 2048, _num_tensorcores())
        while Bp % tile:          # fallback: largest 128-multiple dividing Bp
            tile -= 128
    assert Bp % tile == 0

    wbytes = jnp.dtype(w1.dtype).itemsize
    flops = 2 * Bp * (Fp * Hp + Hp * Hp + Hp * Sp)
    transcendentals = 2 * Bp * Hp
    bytes_accessed = (4 * (Fp + Sp) * Bp
                      + wbytes * (Hp * Fp + Hp * Hp + Sp * Hp)
                      + 4 * (Hp + Sp))

    full = lambda i: (0, 0)   # weights / biases: single full block, VMEM-resident
    return pl.pallas_call(
        functools.partial(_residual_mlp_kernel, s_rows=Sp),
        out_shape=jax.ShapeDtypeStruct((Sp, Bp), out_dtype),
        grid_spec=pltpu.PrefetchScalarGridSpec(
            num_scalar_prefetch=0,
            grid=(Bp // tile,),
            in_specs=[
                pl.BlockSpec((Fp, tile), lambda i: (0, i)),   # x tile (lane-dense)
                pl.BlockSpec((Hp, Fp), full),                 # W1 (+ folded b1)
                pl.BlockSpec((Hp, Hp), full),                 # W2
                pl.BlockSpec((Hp, 1), full),                  # b2 (column)
                pl.BlockSpec((Sp, Hp), full),                 # W3
                pl.BlockSpec((Sp, 1), full),                  # b3 (column)
            ],
            out_specs=pl.BlockSpec((Sp, tile), lambda i: (0, i)),
        ),
        compiler_params=pltpu.CompilerParams(
            dimension_semantics=("parallel",)),
        cost_estimate=pl.CostEstimate(
            flops=flops, transcendentals=transcendentals,
            bytes_accessed=bytes_accessed),
    )(xt, w1, w2, b2, w3, b3)


def residual_dynamics_forward(state, action, kparams, *, tile_b=2048):
    """state: (..., S), action: (..., A) -> next_state: (..., S)."""
    w1, w2, b2, w3, b3 = kparams
    Hp, Fp = w1.shape
    Sp = w3.shape[0]
    S = state.shape[-1]
    A = action.shape[-1]
    assert S + A + 1 <= Fp, "prepare_params must reserve the folded-bias row"
    assert Sp <= Fp, "padded state rows must fit inside the input feature rows"

    lead_shape = state.shape[:-1]
    s2 = state.reshape(-1, S).astype(jnp.float32)
    a2 = action.reshape(-1, A).astype(jnp.float32)
    B = s2.shape[0]
    tile, Bp = _pick_tile(B, tile_b, _num_tensorcores())

    # concat(state, action, 1.0) + feature / batch zero-pad, batch onto lanes.
    ones = jnp.ones((B, 1), jnp.float32)
    x = jnp.concatenate([s2, a2, ones], axis=-1)              # (B, S+A+1)
    x = jnp.pad(x, ((0, Bp - B), (0, Fp - (S + A + 1))))      # (Bp, Fp)
    xt = x.T                                                  # (Fp, Bp)

    out = residual_dynamics_forward_fm(xt, kparams, tile=tile,
                                       out_dtype=state.dtype)
    return out[:S, :B].T.reshape(*lead_shape, S)


def init_params(key, state_dim, action_dim, hidden=HIDDEN, dtype=jnp.float32):
    """PyTorch nn.Linear-style params in torch layout: W (out, in), b (out,)."""
    def linear(k, fan_in, fan_out):
        kw, kb = jax.random.split(k)
        bound = 1.0 / (fan_in ** 0.5)
        w = jax.random.uniform(kw, (fan_out, fan_in), dtype, -bound, bound)
        b = jax.random.uniform(kb, (fan_out,), dtype, -bound, bound)
        return w, b

    k1, k2, k3 = jax.random.split(key, 3)
    w1, b1 = linear(k1, state_dim + action_dim, hidden)
    w2, b2 = linear(k2, hidden, hidden)
    w3, b3 = linear(k3, hidden, state_dim)
    return (w1, b1, w2, b2, w3, b3)


def prepare_params(params, *, weight_dtype=jnp.bfloat16):
    """Torch-layout params -> padded, kernel-ready params.

    Hidden 100 -> 128, input features (S+A+1) -> multiple of 8, output state
    dim -> multiple of 8.  The extra +1 input column holds b1, matched to a
    constant-1.0 input row.  Zero padding is inert (tanh(0)=0, zero biases).
    Weights are stored in weight_dtype (bf16 by default: bf16 MXU operands
    with f32 accumulation); biases stay f32 since the elementwise path is f32.
    """
    w1, b1, w2, b2, w3, b3 = params
    H, F = w1.shape            # F = S + A
    S = w3.shape[0]
    Hp = _round_up(H, 128)
    Fp = _round_up(F + 1, 8)   # +1: folded-bias (ones) row
    Sp = _round_up(S, 8)

    w1a = jnp.concatenate([w1, b1[:, None]], axis=1)          # (H, F+1)
    w1p = jnp.pad(w1a, ((0, Hp - H), (0, Fp - (F + 1))))
    w2p = jnp.pad(w2, ((0, Hp - H), (0, Hp - H)))
    b2p = jnp.pad(b2, (0, Hp - H)).reshape(Hp, 1)
    w3p = jnp.pad(w3, ((0, Sp - S), (0, Hp - H)))
    b3p = jnp.pad(b3, (0, Sp - S)).reshape(Sp, 1)
    return (w1p.astype(weight_dtype), w2p.astype(weight_dtype),
            b2p.astype(jnp.float32), w3p.astype(weight_dtype),
            b3p.astype(jnp.float32))


def _reference_forward(state, action, params):
    """Pure-JAX f32 reference mirroring the PyTorch module exactly."""
    w1, b1, w2, b2, w3, b3 = params
    x = jnp.concatenate([state, action], axis=-1)
    h1 = jnp.tanh(x @ w1.T + b1)
    h2 = jnp.tanh(h1 @ w2.T + b2)
    return h2 @ w3.T + b3 + state


if __name__ == "__main__":
    state_dim, action_dim = 4, 2
    key = jax.random.PRNGKey(0)
    kp, ks, ka = jax.random.split(key, 3)

    params = init_params(kp, state_dim, action_dim)
    kparams_bf16 = prepare_params(params)                           # default: bf16 MXU operands
    kparams_f32 = prepare_params(params, weight_dtype=jnp.float32)  # full-f32 path

    # Batched inputs with arbitrary leading dims, as the torch module allows.
    state = jax.random.normal(ks, (2, 8, state_dim), dtype=jnp.float32)
    action = jax.random.normal(ka, (2, 8, action_dim), dtype=jnp.float32)

    out_f32 = jax.block_until_ready(
        residual_dynamics_forward(state, action, kparams_f32))
    out_bf16 = jax.block_until_ready(
        residual_dynamics_forward(state, action, kparams_bf16))

    ref = _reference_forward(state, action, params)
    assert out_f32.shape == state.shape and out_bf16.shape == state.shape
    assert jnp.allclose(out_f32, ref, atol=1e-4, rtol=1e-4), "f32 path mismatch"
    assert jnp.allclose(out_bf16, ref, atol=3e-2, rtol=3e-2), "bf16 path mismatch"

    print("KERNEL_OK")
</pallas_src>

<mosaic_0001>
module attributes {stable_mosaic.version = 11 : i64} {
  func.func @_residual_mlp_kernel(%arg0: i32, %arg1: memref<8x128xf32, #tpu.memory_space<vmem>>, %arg2: memref<128x8xf32, #tpu.memory_space<vmem>>, %arg3: memref<128x128xf32, #tpu.memory_space<vmem>>, %arg4: memref<128x1xf32, #tpu.memory_space<vmem>>, %arg5: memref<8x128xf32, #tpu.memory_space<vmem>>, %arg6: memref<8x1xf32, #tpu.memory_space<vmem>>, %arg7: memref<8x128xf32, #tpu.memory_space<vmem>>) attributes {dimension_semantics = [#tpu.dimension_semantics<parallel>], iteration_bounds = array<i64: 1>, scalar_prefetch = 0 : i64, scratch_operands = 0 : i64, tpu.core_type = #tpu.core_type<tc>, window_params = [{transform_indices = @transform_0, window_bounds = array<i64: 8, 128>}, {pipeline_mode = #tpu.pipeline_mode<synchronous>, transform_indices = @transform_1, window_bounds = array<i64: 128, 8>}, {pipeline_mode = #tpu.pipeline_mode<synchronous>, transform_indices = @transform_2, window_bounds = array<i64: 128, 128>}, {pipeline_mode = #tpu.pipeline_mode<synchronous>, transform_indices = @transform_3, window_bounds = array<i64: 128, 1>}, {pipeline_mode = #tpu.pipeline_mode<synchronous>, transform_indices = @transform_4, window_bounds = array<i64: 8, 128>}, {pipeline_mode = #tpu.pipeline_mode<synchronous>, transform_indices = @transform_5, window_bounds = array<i64: 8, 1>}, {transform_indices = @transform_6, window_bounds = array<i64: 8, 128>}]} {
    %c0 = arith.constant 0 : index
    %c0_0 = arith.constant 0 : index
    %0 = vector.load %arg1[%c0, %c0_0] : memref<8x128xf32, #tpu.memory_space<vmem>>, vector<8x128xf32>
    %c0_1 = arith.constant 0 : index
    %c0_2 = arith.constant 0 : index
    %1 = vector.load %arg2[%c0_1, %c0_2] : memref<128x8xf32, #tpu.memory_space<vmem>>, vector<128x8xf32>
    %cst = arith.constant dense<0.000000e+00> : vector<128x128xf32>
    %2 = tpu.matmul %1, %0, %cst {dimension_numbers = #tpu.dot_dimension_numbers<[1], [0], [0], [1], [0, 0, 1, 1], [], []>} : vector<128x8xf32>, vector<8x128xf32>, vector<128x128xf32> -> vector<128x128xf32>
    %3 = math.tanh %2 : vector<128x128xf32>
    %c0_3 = arith.constant 0 : index
    %c0_4 = arith.constant 0 : index
    %4 = vector.load %arg3[%c0_3, %c0_4] : memref<128x128xf32, #tpu.memory_space<vmem>>, vector<128x128xf32>
    %cst_5 = arith.constant dense<0.000000e+00> : vector<128x128xf32>
    %5 = tpu.matmul %4, %3, %cst_5 {dimension_numbers = #tpu.dot_dimension_numbers<[1], [0], [0], [1], [0, 0, 1, 1], [], []>} : vector<128x128xf32>, vector<128x128xf32>, vector<128x128xf32> -> vector<128x128xf32>
    %c0_6 = arith.constant 0 : index
    %c0_7 = arith.constant 0 : index
    %6 = vector.load %arg4[%c0_6, %c0_7] : memref<128x1xf32, #tpu.memory_space<vmem>>, vector<128x1xf32>
    %7 = vector.broadcast %6 : vector<128x1xf32> to vector<128x128xf32>
    %8 = arith.addf %5, %7 : vector<128x128xf32>
    %9 = math.tanh %8 : vector<128x128xf32>
    %c0_8 = arith.constant 0 : index
    %c0_9 = arith.constant 0 : index
    %10 = vector.load %arg5[%c0_8, %c0_9] : memref<8x128xf32, #tpu.memory_space<vmem>>, vector<8x128xf32>
    %cst_10 = arith.constant dense<0.000000e+00> : vector<8x128xf32>
    %11 = tpu.matmul %10, %9, %cst_10 {dimension_numbers = #tpu.dot_dimension_numbers<[1], [0], [0], [1], [0, 0, 1, 1], [], []>} : vector<8x128xf32>, vector<128x128xf32>, vector<8x128xf32> -> vector<8x128xf32>
    %c0_11 = arith.constant 0 : index
    %c0_12 = arith.constant 0 : index
    %12 = vector.load %arg6[%c0_11, %c0_12] : memref<8x1xf32, #tpu.memory_space<vmem>>, vector<8x1xf32>
    %13 = vector.broadcast %12 : vector<8x1xf32> to vector<8x128xf32>
    %14 = arith.addf %11, %13 : vector<8x128xf32>
    %15 = arith.addf %14, %0 : vector<8x128xf32>
    %c0_13 = arith.constant 0 : index
    %c0_14 = arith.constant 0 : index
    %16 = vector.load %arg7[%c0_13, %c0_14] : memref<8x128xf32, #tpu.memory_space<vmem>>, vector<8x128xf32>
    tpu.vector_store %arg7[%c0_13, %c0_14], %15 {strides = array<i32>} : memref<8x128xf32, #tpu.memory_space<vmem>>, vector<8x128xf32>,
    return
  }
  func.func @transform_0(%arg0: i32) -> (i32, i32) {
    %c0_i32 = arith.constant 0 : i32
    %c0_i32_0 = arith.constant 0 : i32
    return %c0_i32, %arg0 : i32, i32
  }
  func.func @transform_1(%arg0: i32) -> (i32, i32) {
    %c0_i32 = arith.constant 0 : i32
    %c0_i32_0 = arith.constant 0 : i32
    %c0_i32_1 = arith.constant 0 : i32
    return %c0_i32, %c0_i32_0 : i32, i32
  }
  func.func @transform_2(%arg0: i32) -> (i32, i32) {
    %c0_i32 = arith.constant 0 : i32
    %c0_i32_0 = arith.constant 0 : i32
    %c0_i32_1 = arith.constant 0 : i32
    return %c0_i32, %c0_i32_0 : i32, i32
  }
  func.func @transform_3(%arg0: i32) -> (i32, i32) {
    %c0_i32 = arith.constant 0 : i32
    %c0_i32_0 = arith.constant 0 : i32
    %c0_i32_1 = arith.constant 0 : i32
    return %c0_i32, %c0_i32_0 : i32, i32
  }
  func.func @transform_4(%arg0: i32) -> (i32, i32) {
    %c0_i32 = arith.constant 0 : i32
    %c0_i32_0 = arith.constant 0 : i32
    %c0_i32_1 = arith.constant 0 : i32
    return %c0_i32, %c0_i32_0 : i32, i32
  }
  func.func @transform_5(%arg0: i32) -> (i32, i32) {
    %c0_i32 = arith.constant 0 : i32
    %c0_i32_0 = arith.constant 0 : i32
    %c0_i32_1 = arith.constant 0 : i32
    return %c0_i32, %c0_i32_0 : i32, i32
  }
  func.func @transform_6(%arg0: i32) -> (i32, i32) {
    %c0_i32 = arith.constant 0 : i32
    %c0_i32_0 = arith.constant 0 : i32
    return %c0_i32, %arg0 : i32, i32
  }
}

</mosaic_0001>

<llo_original>
// kernel: tpu_custom_call.1
$region0: #{tpu_custom_call.1}
  #allocation0 [shape = 'u32[]', space=smem, size = 0x4, offset = 0x4, fixed_abs, tag = 'smem constant byte address 0x4 - core index']
  #allocation1 [shape = 'u32[144,128]{1,0:T(1,128)}', space=vmem, size = 0x12000, scoped, tag = 'internal scratch']
  %s0 = inlined_call_operand.vmem [shape: f32[8,128], index: 0, kind: input, shape index: {}]
  %s1 = inlined_call_operand.vmem [shape: f32[128,8], index: 1, kind: input, shape index: {}]
  %s2 = inlined_call_operand.vmem [shape: f32[128,128], index: 2, kind: input, shape index: {}]
  %s3 = inlined_call_operand.vmem [shape: f32[128,1], index: 3, kind: input, shape index: {}]
  %s4 = inlined_call_operand.vmem [shape: f32[8,128], index: 4, kind: input, shape index: {}]
  %s5 = inlined_call_operand.vmem [shape: f32[8,1], index: 5, kind: input, shape index: {}]
  %s6 = inlined_call_operand.hbm [shape: f32[8,128], index: 6, kind: output, shape index: {}]
  %s7 = sld [smem:[#allocation0]]
  $region34: #{tpu_custom_call.1} parent=0
    _
  %s9 = ssub.s32 1, %s7
  %s10 = scalar_select 0, %s9, %s7
  $region1: #{tpu_custom_call.1} parent=0
    #allocation2 [shape = 'u8[4096]{0}', space=vmem, size = 0x1000, scoped, tag = 'output window, operand 0, single buffered']
    #allocation3 [shape = 's32[1]{0}', space=sflag, size = 0x4, scoped, tag = 'scoped memory for tpu_custom_call.1']
    %11 = vsyncpa [#allocation3], 0
    // Predicated region
    $region2: #{tpu_custom_call.1} parent=1 // pred_check
      _
    $region3: #{tpu_custom_call.1} parent=1 // pred_check_branch
      %13 = sbr.rel (0) target = $region5
    $region4: #{tpu_custom_call.1} parent=1 // pred_region
      _
    $region5: #{tpu_custom_call.1} parent=1 // pred_fallthru
      _
    // Predicated region
    $region6: #{tpu_custom_call.1} parent=1 // pred_check
      _
    $region7: #{tpu_custom_call.1} parent=1 // pred_check_branch
      %15 = sbr.rel (0) target = $region9
    $region8: #{tpu_custom_call.1} parent=1 // pred_region
      _
    $region9: #{tpu_custom_call.1} parent=1 // pred_fallthru
      _
    // Predicated region
    $region10: #{tpu_custom_call.1} parent=1 // pred_check
      _
    $region11: #{tpu_custom_call.1} parent=1 // pred_check_branch
      %17 = sbr.rel (0) target = $region13
    $region12: #{tpu_custom_call.1} parent=1 // pred_region
      _
    $region13: #{tpu_custom_call.1} parent=1 // pred_fallthru
      _
    // Predicated region
    $region14: #{tpu_custom_call.1} parent=1 // pred_check
      _
    $region15: #{tpu_custom_call.1} parent=1 // pred_check_branch
      %19 = sbr.rel (0) target = $region17
    $region16: #{tpu_custom_call.1} parent=1 // pred_region
      _
    $region17: #{tpu_custom_call.1} parent=1 // pred_fallthru
      _
    // Predicated region
    $region18: #{tpu_custom_call.1} parent=1 // pred_check
      _
    $region19: #{tpu_custom_call.1} parent=1 // pred_check_branch
      %21 = sbr.rel (0) target = $region21
    $region20: #{tpu_custom_call.1} parent=1 // pred_region
      _
    $region21: #{tpu_custom_call.1} parent=1 // pred_fallthru
      _
    // Predicated region
    $region22: #{tpu_custom_call.1} parent=1 // pred_check
      _
    $region23: #{tpu_custom_call.1} parent=1 // pred_check_branch
      %23 = sbr.rel (0) target = $region25
    $region24: #{tpu_custom_call.1} parent=1 // pred_region
      _
    $region25: #{tpu_custom_call.1} parent=1 // pred_fallthru
      _
    %v24 = vld [vmem:[%s0] sm:$0xff]
    %v25 = vld [vmem:[%s1] sm:$0xff]
    %v26 = vld [vmem:[%s1 + $0x8] sm:$0xff]
    %v27 = vld [vmem:[%s1 + $0x10] sm:$0xff]
    %v28 = vld [vmem:[%s1 + $0x18] sm:$0xff]
    %v29 = vld [vmem:[%s1 + $0x20] sm:$0xff]
    %v30 = vld [vmem:[%s1 + $0x28] sm:$0xff]
    %v31 = vld [vmem:[%s1 + $0x30] sm:$0xff]
    %v32 = vld [vmem:[%s1 + $0x38] sm:$0xff]
    %v33 = vld [vmem:[%s1 + $0x40] sm:$0xff]
    %v34 = vld [vmem:[%s1 + $0x48] sm:$0xff]
    %v35 = vld [vmem:[%s1 + $0x50] sm:$0xff]
    %v36 = vld [vmem:[%s1 + $0x58] sm:$0xff]
    %v37 = vld [vmem:[%s1 + $0x60] sm:$0xff]
    %v38 = vld [vmem:[%s1 + $0x68] sm:$0xff]
    %v39 = vld [vmem:[%s1 + $0x70] sm:$0xff]
    %v40 = vld [vmem:[%s1 + $0x78] sm:$0xff]
    %vm41 = vcmask 64512
    %v43 = vsel %vm41, %v25, 0
    %v46 = vsel %vm41, %v26, 0
    %v49 = vsel %vm41, %v27, 0
    %v52 = vsel %vm41, %v28, 0
    %v55 = vsel %vm41, %v29, 0
    %v58 = vsel %vm41, %v30, 0
    %v61 = vsel %vm41, %v31, 0
    %v64 = vsel %vm41, %v32, 0
    %v67 = vsel %vm41, %v33, 0
    %v70 = vsel %vm41, %v34, 0
    %v73 = vsel %vm41, %v35, 0
    %v76 = vsel %vm41, %v36, 0
    %v79 = vsel %vm41, %v37, 0
    %v82 = vsel %vm41, %v38, 0
    %v85 = vsel %vm41, %v39, 0
    %v88 = vsel %vm41, %v40, 0
    %90 = vmatprep.subr.mxu0 0.0
    %91 = vmatpush1.msra.mxu0 0.0
    %92 = vmatprep.subr.mxu0 0.0
    %93 = vmatpush1.msra.mxu0 0.0
    %94 = vmatprep.subr.mxu0 0.0
    %95 = vmatpush1.msra.mxu0 0.0
    %96 = vmatprep.subr.mxu0 0.0
    %97 = vmatpush1.msra.mxu0 0.0
    %98 = vmatprep.subr.mxu0 0.0
    %99 = vmatpush1.msra.mxu0 0.0
    %100 = vmatprep.subr.mxu0 0.0
    %101 = vmatpush1.msra.mxu0 0.0
    %102 = vmatprep.subr.mxu0 0.0
    %103 = vmatpush1.msra.mxu0 0.0
    %104 = vmatprep.subr.mxu0 0.0
    %105 = vmatpush1.msra.mxu0 0.0
    %106 = vmatprep.subr.mxu0 0.0
    %107 = vmatpush1.msra.mxu0 0.0
    %108 = vmatprep.subr.mxu0 0.0
    %109 = vmatpush1.msra.mxu0 0.0
    %110 = vmatprep.subr.mxu0 0.0
    %111 = vmatpush1.msra.mxu0 0.0
    %112 = vmatprep.subr.mxu0 0.0
    %113 = vmatpush1.msra.mxu0 0.0
    %114 = vmatprep.subr.mxu0 0.0
    %115 = vmatpush1.msra.mxu0 0.0
    %116 = vmatprep.subr.mxu0 0.0
    %117 = vmatpush1.msra.mxu0 0.0
    %118 = vmatprep.subr.mxu0 0.0
    %119 = vmatpush1.msra.mxu0 0.0
    %120 = vmatprep.subr.mxu0 0.0
    %121 = vmatpush1.msra.mxu0 %v24
    %122 = vmatprep.subr.mxu0 0.0
    %123 = vmatpush2.msra.mxu0 0.0
    %124 = vmatprep.subr.mxu0 0.0
    %125 = vmatpush2.msra.mxu0 0.0
    %126 = vmatprep.subr.mxu0 0.0
    %127 = vmatpush2.msra.mxu0 0.0
    %128 = vmatprep.subr.mxu0 0.0
    %129 = vmatpush2.msra.mxu0 0.0
    %130 = vmatprep.subr.mxu0 0.0
    %131 = vmatpush2.msra.mxu0 0.0
    %132 = vmatprep.subr.mxu0 0.0
    %133 = vmatpush2.msra.mxu0 0.0
    %134 = vmatprep.subr.mxu0 0.0
    %135 = vmatpush2.msra.mxu0 0.0
    %136 = vmatprep.subr.mxu0 0.0
    %137 = vmatpush2.msra.mxu0 0.0
    %138 = vmatprep.subr.mxu0 0.0
    %139 = vmatpush2.msra.mxu0 0.0
    %140 = vmatprep.subr.mxu0 0.0
    %141 = vmatpush2.msra.mxu0 0.0
    %142 = vmatprep.subr.mxu0 0.0
    %143 = vmatpush2.msra.mxu0 0.0
    %144 = vmatprep.subr.mxu0 0.0
    %145 = vmatpush2.msra.mxu0 0.0
    %146 = vmatprep.subr.mxu0 0.0
    %147 = vmatpush2.msra.mxu0 0.0
    %148 = vmatprep.subr.mxu0 0.0
    %149 = vmatpush2.msra.mxu0 0.0
    %150 = vmatprep.subr.mxu0 0.0
    %151 = vmatpush2.msra.mxu0 0.0
    %152 = vmatprep.subr.mxu0 0.0
    %153 = vmatpush2.msra.mxu0 0.0
    %154 = vmatprep.mubr.f32.mxu0 0.0
    %155 = vmatmul.mubr.f32.gmra.mxu0 %v43
    %v156 = vpop.f32.mrf.mxu0
    %v157 = vadd.f32 0.0, %v156
    %v158 = vpop.f32.mrf.mxu0
    %159 = vmatprep.mubr.f32.mxu0 0.0
    %160 = vmatmul.mubr.f32.gmra.mxu0 %v46
    %v161 = vpop.f32.mrf.mxu0
    %v162 = vadd.f32 0.0, %v161
    %v163 = vpop.f32.mrf.mxu0
    %164 = vmatprep.mubr.f32.mxu0 0.0
    %165 = vmatmul.mubr.f32.gmra.mxu0 %v49
    %v166 = vpop.f32.mrf.mxu0
    %v167 = vadd.f32 0.0, %v166
    %v168 = vpop.f32.mrf.mxu0
    %169 = vmatprep.mubr.f32.mxu0 0.0
    %170 = vmatmul.mubr.f32.gmra.mxu0 %v52
    %v171 = vpop.f32.mrf.mxu0
    %v172 = vadd.f32 0.0, %v171
    %v173 = vpop.f32.mrf.mxu0
    %174 = vmatprep.mubr.f32.mxu0 0.0
    %175 = vmatmul.mubr.f32.gmra.mxu0 %v55
    %v176 = vpop.f32.mrf.mxu0
    %v177 = vadd.f32 0.0, %v176
    %v178 = vpop.f32.mrf.mxu0
    %179 = vmatprep.mubr.f32.mxu0 0.0
    %180 = vmatmul.mubr.f32.gmra.mxu0 %v58
    %v181 = vpop.f32.mrf.mxu0
    %v182 = vadd.f32 0.0, %v181
    %v183 = vpop.f32.mrf.mxu0
    %184 = vmatprep.mubr.f32.mxu0 0.0
    %185 = vmatmul.mubr.f32.gmra.mxu0 %v61
    %v186 = vpop.f32.mrf.mxu0
    %v187 = vadd.f32 0.0, %v186
    %v188 = vpop.f32.mrf.mxu0
    %189 = vmatprep.mubr.f32.mxu0 0.0
    %190 = vmatmul.mubr.f32.gmra.mxu0 %v64
    %v191 = vpop.f32.mrf.mxu0
    %v192 = vadd.f32 0.0, %v191
    %v193 = vpop.f32.mrf.mxu0
    %194 = vmatprep.mubr.f32.mxu0 0.0
    %195 = vmatmul.mubr.f32.gmra.mxu0 %v67
    %v196 = vpop.f32.mrf.mxu0
    %v197 = vadd.f32 0.0, %v196
    %v198 = vpop.f32.mrf.mxu0
    %199 = vmatprep.mubr.f32.mxu0 0.0
    %200 = vmatmul.mubr.f32.gmra.mxu0 %v70
    %v201 = vpop.f32.mrf.mxu0
    %v202 = vadd.f32 0.0, %v201
    %v203 = vpop.f32.mrf.mxu0
    %204 = vmatprep.mubr.f32.mxu0 0.0
    %205 = vmatmul.mubr.f32.gmra.mxu0 %v73
    %v206 = vpop.f32.mrf.mxu0
    %v207 = vadd.f32 0.0, %v206
    %v208 = vpop.f32.mrf.mxu0
    %209 = vmatprep.mubr.f32.mxu0 0.0
    %210 = vmatmul.mubr.f32.gmra.mxu0 %v76
    %v211 = vpop.f32.mrf.mxu0
    %v212 = vadd.f32 0.0, %v211
    %v213 = vpop.f32.mrf.mxu0
    %214 = vmatprep.mubr.f32.mxu0 0.0
    %215 = vmatmul.mubr.f32.gmra.mxu0 %v79
    %v216 = vpop.f32.mrf.mxu0
    %v217 = vadd.f32 0.0, %v216
    %v218 = vpop.f32.mrf.mxu0
    %219 = vmatprep.mubr.f32.mxu0 0.0
    %220 = vmatmul.mubr.f32.gmra.mxu0 %v82
    %v221 = vpop.f32.mrf.mxu0
    %v222 = vadd.f32 0.0, %v221
    %v223 = vpop.f32.mrf.mxu0
    %224 = vmatprep.mubr.f32.mxu0 0.0
    %225 = vmatmul.mubr.f32.gmra.mxu0 %v85
    %v226 = vpop.f32.mrf.mxu0
    %v227 = vadd.f32 0.0, %v226
    %v228 = vpop.f32.mrf.mxu0
    %229 = vmatprep.mubr.f32.mxu0 0.0
    %230 = vmatmul.mubr.f32.gmra.mxu0 %v88
    %v231 = vpop.f32.mrf.mxu0
    %v232 = vadd.f32 0.0, %v231
    %v233 = vpop.f32.mrf.mxu0
    %234 = vdwg.mxu0
    %v235 = vtanh.pop %v157
    %v236 = vtanh.pop %v162
    %v237 = vtanh.pop %v167
    %v238 = vtanh.pop %v172
    %v239 = vtanh.pop %v177
    %v240 = vtanh.pop %v182
    %v241 = vtanh.pop %v187
    %v242 = vtanh.pop %v192
    %v243 = vtanh.pop %v197
    %v244 = vtanh.pop %v202
    %v245 = vtanh.pop %v207
    %v246 = vtanh.pop %v212
    %v247 = vtanh.pop %v217
    %v248 = vtanh.pop %v222
    %v249 = vtanh.pop %v227
    %v250 = vtanh.pop %v232
    %v251 = vld [vmem:[%s2] sm:$0xff]
    %v252 = vld [vmem:[%s2 + $0x8] sm:$0xff]
    %v253 = vld [vmem:[%s2 + $0x10] sm:$0xff]
    %v254 = vld [vmem:[%s2 + $0x18] sm:$0xff]
    %v255 = vld [vmem:[%s2 + $0x20] sm:$0xff]
    %v256 = vld [vmem:[%s2 + $0x28] sm:$0xff]
    %v257 = vld [vmem:[%s2 + $0x30] sm:$0xff]
    %v258 = vld [vmem:[%s2 + $0x38] sm:$0xff]
    %v259 = vld [vmem:[%s2 + $0x40] sm:$0xff]
    %v260 = vld [vmem:[%s2 + $0x48] sm:$0xff]
    %v261 = vld [vmem:[%s2 + $0x50] sm:$0xff]
    %v262 = vld [vmem:[%s2 + $0x58] sm:$0xff]
    %v263 = vld [vmem:[%s2 + $0x60] sm:$0xff]
    %v264 = vld [vmem:[%s2 + $0x68] sm:$0xff]
    %v265 = vld [vmem:[%s2 + $0x70] sm:$0xff]
    %v266 = vld [vmem:[%s2 + $0x78] sm:$0xff]
    %v267 = vld [vmem:[%s3] sm:$0xff]
    %v268 = vld [vmem:[%s3 + $0x8] sm:$0xff]
    %v269 = vld [vmem:[%s3 + $0x10] sm:$0xff]
    %v270 = vld [vmem:[%s3 + $0x18] sm:$0xff]
    %v271 = vld [vmem:[%s3 + $0x20] sm:$0xff]
    %v272 = vld [vmem:[%s3 + $0x28] sm:$0xff]
    %v273 = vld [vmem:[%s3 + $0x30] sm:$0xff]
    %v274 = vld [vmem:[%s3 + $0x38] sm:$0xff]
    %v275 = vld [vmem:[%s3 + $0x40] sm:$0xff]
    %v276 = vld [vmem:[%s3 + $0x48] sm:$0xff]
    %v277 = vld [vmem:[%s3 + $0x50] sm:$0xff]
    %v278 = vld [vmem:[%s3 + $0x58] sm:$0xff]
    %v279 = vld [vmem:[%s3 + $0x60] sm:$0xff]
    %v280 = vld [vmem:[%s3 + $0x68] sm:$0xff]
    %v281 = vld [vmem:[%s3 + $0x70] sm:$0xff]
    %v282 = vld [vmem:[%s3 + $0x78] sm:$0xff]
    %284 = vset.pattern.permute.xlu0 0
    %285 = vperm.xlu0 %284, %v267
    %v286 = vpop.permute.xlu0 %285
    %289 = vset.pattern.permute.xlu0 0
    %290 = vperm.xlu0 %289, %v268
    %v291 = vpop.permute.xlu0 %290
    %294 = vset.pattern.permute.xlu0 0
    %295 = vperm.xlu0 %294, %v269
    %v296 = vpop.permute.xlu0 %295
    %299 = vset.pattern.permute.xlu0 0
    %300 = vperm.xlu0 %299, %v270
    %v301 = vpop.permute.xlu0 %300
    %304 = vset.pattern.permute.xlu0 0
    %305 = vperm.xlu0 %304, %v271
    %v306 = vpop.permute.xlu0 %305
    %309 = vset.pattern.permute.xlu0 0
    %310 = vperm.xlu0 %309, %v272
    %v311 = vpop.permute.xlu0 %310
    %314 = vset.pattern.permute.xlu0 0
    %315 = vperm.xlu0 %314, %v273
    %v316 = vpop.permute.xlu0 %315
    %319 = vset.pattern.permute.xlu0 0
    %320 = vperm.xlu0 %319, %v274
    %v321 = vpop.permute.xlu0 %320
    %324 = vset.pattern.permute.xlu0 0
    %325 = vperm.xlu0 %324, %v275
    %v326 = vpop.permute.xlu0 %325
    %329 = vset.pattern.permute.xlu0 0
    %330 = vperm.xlu0 %329, %v276
    %v331 = vpop.permute.xlu0 %330
    %334 = vset.pattern.permute.xlu0 0
    %335 = vperm.xlu0 %334, %v277
    %v336 = vpop.permute.xlu0 %335
    %339 = vset.pattern.permute.xlu0 0
    %340 = vperm.xlu0 %339, %v278
    %v341 = vpop.permute.xlu0 %340
    %344 = vset.pattern.permute.xlu0 0
    %345 = vperm.xlu0 %344, %v279
    %v346 = vpop.permute.xlu0 %345
    %349 = vset.pattern.permute.xlu0 0
    %350 = vperm.xlu0 %349, %v280
    %v351 = vpop.permute.xlu0 %350
    %354 = vset.pattern.permute.xlu0 0
    %355 = vperm.xlu0 %354, %v281
    %v356 = vpop.permute.xlu0 %355
    %359 = vset.pattern.permute.xlu0 0
    %360 = vperm.xlu0 %359, %v282
    %v361 = vpop.permute.xlu0 %360
    %363 = vmatprep.subr.mxu0 0.0
    %364 = vmatpush1.msra.mxu0 %v250
    %365 = vmatprep.subr.mxu0 0.0
    %366 = vmatpush1.msra.mxu0 %v249
    %367 = vmatprep.subr.mxu0 0.0
    %368 = vmatpush1.msra.mxu0 %v248
    %369 = vmatprep.subr.mxu0 0.0
    %370 = vmatpush1.msra.mxu0 %v247
    %371 = vmatprep.subr.mxu0 0.0
    %372 = vmatpush1.msra.mxu0 %v246
    %373 = vmatprep.subr.mxu0 0.0
    %374 = vmatpush1.msra.mxu0 %v245
    %375 = vmatprep.subr.mxu0 0.0
    %376 = vmatpush1.msra.mxu0 %v244
    %377 = vmatprep.subr.mxu0 0.0
    %378 = vmatpush1.msra.mxu0 %v243
    %379 = vmatprep.subr.mxu0 0.0
    %380 = vmatpush1.msra.mxu0 %v242
    %381 = vmatprep.subr.mxu0 0.0
    %382 = vmatpush1.msra.mxu0 %v241
    %383 = vmatprep.subr.mxu0 0.0
    %384 = vmatpush1.msra.mxu0 %v240
    %385 = vmatprep.subr.mxu0 0.0
    %386 = vmatpush1.msra.mxu0 %v239
    %387 = vmatprep.subr.mxu0 0.0
    %388 = vmatpush1.msra.mxu0 %v238
    %389 = vmatprep.subr.mxu0 0.0
    %390 = vmatpush1.msra.mxu0 %v237
    %391 = vmatprep.subr.mxu0 0.0
    %392 = vmatpush1.msra.mxu0 %v236
    %393 = vmatprep.subr.mxu0 0.0
    %394 = vmatpush1.msra.mxu0 %v235
    %395 = vmatprep.subr.mxu0 0.0
    %396 = vmatpush2.msra.mxu0 0.0
    %397 = vmatprep.subr.mxu0 0.0
    %398 = vmatpush2.msra.mxu0 0.0
    %399 = vmatprep.subr.mxu0 0.0
    %400 = vmatpush2.msra.mxu0 0.0
    %401 = vmatprep.subr.mxu0 0.0
    %402 = vmatpush2.msra.mxu0 0.0
    %403 = vmatprep.subr.mxu0 0.0
    %404 = vmatpush2.msra.mxu0 0.0
    %405 = vmatprep.subr.mxu0 0.0
    %406 = vmatpush2.msra.mxu0 0.0
    %407 = vmatprep.subr.mxu0 0.0
    %408 = vmatpush2.msra.mxu0 0.0
    %409 = vmatprep.subr.mxu0 0.0
    %410 = vmatpush2.msra.mxu0 0.0
    %411 = vmatprep.subr.mxu0 0.0
    %412 = vmatpush2.msra.mxu0 0.0
    %413 = vmatprep.subr.mxu0 0.0
    %414 = vmatpush2.msra.mxu0 0.0
    %415 = vmatprep.subr.mxu0 0.0
    %416 = vmatpush2.msra.mxu0 0.0
    %417 = vmatprep.subr.mxu0 0.0
    %418 = vmatpush2.msra.mxu0 0.0
    %419 = vmatprep.subr.mxu0 0.0
    %420 = vmatpush2.msra.mxu0 0.0
    %421 = vmatprep.subr.mxu0 0.0
    %422 = vmatpush2.msra.mxu0 0.0
    %423 = vmatprep.subr.mxu0 0.0
    %424 = vmatpush2.msra.mxu0 0.0
    %425 = vmatprep.subr.mxu0 0.0
    %426 = vmatpush2.msra.mxu0 0.0
    %427 = vmatprep.mubr.f32.mxu0 0.0
    %428 = vmatmul.mubr.f32.gmra.mxu0 %v251
    %v429 = vpop.f32.mrf.mxu0
    %v430 = vadd.f32 %v286, %v429
    %v431 = vpop.f32.mrf.mxu0
    %432 = vmatprep.mubr.f32.mxu0 0.0
    %433 = vmatmul.mubr.f32.gmra.mxu0 %v252
    %v434 = vpop.f32.mrf.mxu0
    %v435 = vadd.f32 %v291, %v434
    %v436 = vpop.f32.mrf.mxu0
    %437 = vmatprep.mubr.f32.mxu0 0.0
    %438 = vmatmul.mubr.f32.gmra.mxu0 %v253
    %v439 = vpop.f32.mrf.mxu0
    %v440 = vadd.f32 %v296, %v439
    %v441 = vpop.f32.mrf.mxu0
    %442 = vmatprep.mubr.f32.mxu0 0.0
    %443 = vmatmul.mubr.f32.gmra.mxu0 %v254
    %v444 = vpop.f32.mrf.mxu0
    %v445 = vadd.f32 %v301, %v444
    %v446 = vpop.f32.mrf.mxu0
    %447 = vmatprep.mubr.f32.mxu0 0.0
    %448 = vmatmul.mubr.f32.gmra.mxu0 %v255
    %v449 = vpop.f32.mrf.mxu0
    %v450 = vadd.f32 %v306, %v449
    %v451 = vpop.f32.mrf.mxu0
    %452 = vmatprep.mubr.f32.mxu0 0.0
    %453 = vmatmul.mubr.f32.gmra.mxu0 %v256
    %v454 = vpop.f32.mrf.mxu0
    %v455 = vadd.f32 %v311, %v454
    %v456 = vpop.f32.mrf.mxu0
    %457 = vmatprep.mubr.f32.mxu0 0.0
    %458 = vmatmul.mubr.f32.gmra.mxu0 %v257
    %v459 = vpop.f32.mrf.mxu0
    %v460 = vadd.f32 %v316, %v459
    %v461 = vpop.f32.mrf.mxu0
    %462 = vmatprep.mubr.f32.mxu0 0.0
    %463 = vmatmul.mubr.f32.gmra.mxu0 %v258
    %v464 = vpop.f32.mrf.mxu0
    %v465 = vadd.f32 %v321, %v464
    %v466 = vpop.f32.mrf.mxu0
    %467 = vmatprep.mubr.f32.mxu0 0.0
    %468 = vmatmul.mubr.f32.gmra.mxu0 %v259
    %v469 = vpop.f32.mrf.mxu0
    %v470 = vadd.f32 %v326, %v469
    %v471 = vpop.f32.mrf.mxu0
    %472 = vmatprep.mubr.f32.mxu0 0.0
    %473 = vmatmul.mubr.f32.gmra.mxu0 %v260
    %v474 = vpop.f32.mrf.mxu0
    %v475 = vadd.f32 %v331, %v474
    %v476 = vpop.f32.mrf.mxu0
    %477 = vmatprep.mubr.f32.mxu0 0.0
    %478 = vmatmul.mubr.f32.gmra.mxu0 %v261
    %v479 = vpop.f32.mrf.mxu0
    %v480 = vadd.f32 %v336, %v479
    %v481 = vpop.f32.mrf.mxu0
    %482 = vmatprep.mubr.f32.mxu0 0.0
    %483 = vmatmul.mubr.f32.gmra.mxu0 %v262
    %v484 = vpop.f32.mrf.mxu0
    %v485 = vadd.f32 %v341, %v484
    %v486 = vpop.f32.mrf.mxu0
    %487 = vmatprep.mubr.f32.mxu0 0.0
    %488 = vmatmul.mubr.f32.gmra.mxu0 %v263
    %v489 = vpop.f32.mrf.mxu0
    %v490 = vadd.f32 %v346, %v489
    %v491 = vpop.f32.mrf.mxu0
    %492 = vmatprep.mubr.f32.mxu0 0.0
    %493 = vmatmul.mubr.f32.gmra.mxu0 %v264
    %v494 = vpop.f32.mrf.mxu0
    %v495 = vadd.f32 %v351, %v494
    %v496 = vpop.f32.mrf.mxu0
    %497 = vmatprep.mubr.f32.mxu0 0.0
    %498 = vmatmul.mubr.f32.gmra.mxu0 %v265
    %v499 = vpop.f32.mrf.mxu0
    %v500 = vadd.f32 %v356, %v499
    %v501 = vpop.f32.mrf.mxu0
    %502 = vmatprep.mubr.f32.mxu0 0.0
    %503 = vmatmul.mubr.f32.gmra.mxu0 %v266
    %v504 = vpop.f32.mrf.mxu0
    %v505 = vadd.f32 %v361, %v504
    %v506 = vpop.f32.mrf.mxu0
    %507 = vdwg.mxu0
    %v508 = vtanh.pop %v430
    %v509 = vtanh.pop %v435
    %v510 = vtanh.pop %v440
    %v511 = vtanh.pop %v445
    %v512 = vtanh.pop %v450
    %v513 = vtanh.pop %v455
    %v514 = vtanh.pop %v460
    %v515 = vtanh.pop %v465
    %v516 = vtanh.pop %v470
    %v517 = vtanh.pop %v475
    %v518 = vtanh.pop %v480
    %v519 = vtanh.pop %v485
    %v520 = vtanh.pop %v490
    %v521 = vtanh.pop %v495
    %v522 = vtanh.pop %v500
    %v523 = vtanh.pop %v505
    %v524 = vld [vmem:[%s4] sm:$0xff]
    %v525 = vld [vmem:[%s5] sm:$0xff]
    %527 = vset.pattern.permute.xlu0 0
    %528 = vperm.xlu0 %527, %v525
    %v529 = vpop.permute.xlu0 %528
    %531 = vmatprep.subr.mxu0 0.0
    %532 = vmatpush1.msra.mxu0 %v523
    %533 = vmatprep.subr.mxu0 0.0
    %534 = vmatpush1.msra.mxu0 %v522
    %535 = vmatprep.subr.mxu0 0.0
    %536 = vmatpush1.msra.mxu0 %v521
    %537 = vmatprep.subr.mxu0 0.0
    %538 = vmatpush1.msra.mxu0 %v520
    %539 = vmatprep.subr.mxu0 0.0
    %540 = vmatpush1.msra.mxu0 %v519
    %541 = vmatprep.subr.mxu0 0.0
    %542 = vmatpush1.msra.mxu0 %v518
    %543 = vmatprep.subr.mxu0 0.0
    %544 = vmatpush1.msra.mxu0 %v517
    %545 = vmatprep.subr.mxu0 0.0
    %546 = vmatpush1.msra.mxu0 %v516
    %547 = vmatprep.subr.mxu0 0.0
    %548 = vmatpush1.msra.mxu0 %v515
    %549 = vmatprep.subr.mxu0 0.0
    %550 = vmatpush1.msra.mxu0 %v514
    %551 = vmatprep.subr.mxu0 0.0
    %552 = vmatpush1.msra.mxu0 %v513
    %553 = vmatprep.subr.mxu0 0.0
    %554 = vmatpush1.msra.mxu0 %v512
    %555 = vmatprep.subr.mxu0 0.0
    %556 = vmatpush1.msra.mxu0 %v511
    %557 = vmatprep.subr.mxu0 0.0
    %558 = vmatpush1.msra.mxu0 %v510
    %559 = vmatprep.subr.mxu0 0.0
    %560 = vmatpush1.msra.mxu0 %v509
    %561 = vmatprep.subr.mxu0 0.0
    %562 = vmatpush1.msra.mxu0 %v508
    %563 = vmatprep.subr.mxu0 0.0
    %564 = vmatpush2.msra.mxu0 0.0
    %565 = vmatprep.subr.mxu0 0.0
    %566 = vmatpush2.msra.mxu0 0.0
    %567 = vmatprep.subr.mxu0 0.0
    %568 = vmatpush2.msra.mxu0 0.0
    %569 = vmatprep.subr.mxu0 0.0
    %570 = vmatpush2.msra.mxu0 0.0
    %571 = vmatprep.subr.mxu0 0.0
    %572 = vmatpush2.msra.mxu0 0.0
    %573 = vmatprep.subr.mxu0 0.0
    %574 = vmatpush2.msra.mxu0 0.0
    %575 = vmatprep.subr.mxu0 0.0
    %576 = vmatpush2.msra.mxu0 0.0
    %577 = vmatprep.subr.mxu0 0.0
    %578 = vmatpush2.msra.mxu0 0.0
    %579 = vmatprep.subr.mxu0 0.0
    %580 = vmatpush2.msra.mxu0 0.0
    %581 = vmatprep.subr.mxu0 0.0
    %582 = vmatpush2.msra.mxu0 0.0
    %583 = vmatprep.subr.mxu0 0.0
    %584 = vmatpush2.msra.mxu0 0.0
    %585 = vmatprep.subr.mxu0 0.0
    %586 = vmatpush2.msra.mxu0 0.0
    %587 = vmatprep.subr.mxu0 0.0
    %588 = vmatpush2.msra.mxu0 0.0
    %589 = vmatprep.subr.mxu0 0.0
    %590 = vmatpush2.msra.mxu0 0.0
    %591 = vmatprep.subr.mxu0 0.0
    %592 = vmatpush2.msra.mxu0 0.0
    %593 = vmatprep.subr.mxu0 0.0
    %594 = vmatpush2.msra.mxu0 0.0
    %595 = vmatprep.mubr.f32.mxu0 0.0
    %596 = vmatmul.mubr.f32.gmra.mxu0 %v524
    %v597 = vpop.f32.mrf.mxu0
    %v598 = vadd.f32 %v529, %v597
    %v599 = vpop.f32.mrf.mxu0
    %600 = vdwg.mxu0
    %v601 = vadd.f32 %v598, %v24
    %602 = vst [vmem:[#allocation2] sm:$0xff] %v601
    // Predicated region
    $region26: #{tpu_custom_call.1} parent=1 // pred_check
      _
    $region27: #{tpu_custom_call.1} parent=1 // pred_check_branch
      %604 = sbr.rel (0) target = $region29
    $region28: #{tpu_custom_call.1} parent=1 // pred_region
      %s606 = ssub.s32 128, 128
      %607 = vsyncadd [#allocation3], %s606
      %s609 = sshll.u32 [#allocation2], 4
      %s610 = int_to_ptr.vmem [resolvable:$true] %s609
      %612 = dma.vmem_to_hbm [thread:$0]  %s610, 128, %s6, [#allocation3]
    $region29: #{tpu_custom_call.1} parent=1 // pred_fallthru
      _
    // Predicated region
    $region30: #{tpu_custom_call.1} parent=1 // pred_check
      _
    $region31: #{tpu_custom_call.1} parent=1 // pred_check_branch
      %614 = sbr.rel (0) target = $region33
    $region32: #{tpu_custom_call.1} parent=1 // pred_region
      %615 = dma.done [#allocation3], 128
    $region33: #{tpu_custom_call.1} parent=1 // pred_fallthru
      _
    %616 = vsyncpa [#allocation3], 1

</llo_original>
